<compile_context>
chip_gen: v7x
topology: tpu7x:2x2x1
jax: 0.10.0
libtpu: 0.0.40
codegen_flags: <defaults>
</compile_context>

<pallas_src>
import functools
import math

import jax
import jax.numpy as jnp
from jax.experimental import pallas as pl
from jax.experimental.pallas import tpu as pltpu  # noqa: F401  (kept for TPU-specific params if needed)


def _fused_mlp_kernel(*refs, num_layers, bias_offsets):
    """refs = (x_ref, w_0, ..., w_{L-1}, b_concat_ref, o_ref).

    x_ref, w_i: bf16;  b_concat_ref: f32 (1, total_out);  o_ref: f32 (N, n_classes).
    Matmuls on the MXU with f32 accumulation; bias + ReLU epilogue in f32 on the VPU.
    """
    x_ref = refs[0]
    w_refs = refs[1:1 + num_layers]
    b_ref = refs[1 + num_layers]
    o_ref = refs[2 + num_layers]

    b_all = b_ref[...]          # (1, total_out) f32, single padded vreg tile
    h = x_ref[...]              # (N, in) bf16
    for i in range(num_layers):
        start, size = bias_offsets[i]
        y = jnp.dot(h, w_refs[i][...], preferred_element_type=jnp.float32)
        y = y + b_all[:, start:start + size]      # f32 epilogue (broadcast over batch)
        if i < num_layers - 1:
            y = jnp.maximum(y, 0.0)               # ReLU in f32
            h = y.astype(jnp.bfloat16)            # bf16 only to feed the next MXU matmul
        else:
            o_ref[...] = y.astype(o_ref.dtype)    # final classifier layer: no activation


def fused_mlp_pallas(x_bf16, weights_bf16, bias_concat_f32):
    """Single fused pallas_call for the whole MLP.

    x_bf16: (N, in) bf16, weights_bf16: list of (d_in, d_out) bf16,
    bias_concat_f32: (1, sum(d_out)) f32.  Returns (N, n_classes) f32.
    """
    n = x_bf16.shape[0]
    num_layers = len(weights_bf16)
    d_outs = [w.shape[1] for w in weights_bf16]

    bias_offsets = []
    start = 0
    for d in d_outs:
        bias_offsets.append((start, d))
        start += d
    out_dim = d_outs[-1]

    kernel = functools.partial(
        _fused_mlp_kernel,
        num_layers=num_layers,
        bias_offsets=tuple(bias_offsets),
    )

    in_specs = [pl.BlockSpec(x_bf16.shape, lambda: (0, 0))]
    in_specs += [pl.BlockSpec(w.shape, lambda: (0, 0)) for w in weights_bf16]
    in_specs += [pl.BlockSpec(bias_concat_f32.shape, lambda: (0, 0))]

    # No grid: every block equals the full array (tiny shapes -> everything fits in VMEM).
    return pl.pallas_call(
        kernel,
        out_shape=jax.ShapeDtypeStruct((n, out_dim), jnp.float32),
        in_specs=in_specs,
        out_specs=pl.BlockSpec((n, out_dim), lambda: (0, 0)),
    )(x_bf16, *weights_bf16, bias_concat_f32)


def init_base_mlp_params(key, input_dim, hidden_dim, num_layers, n_classes):
    """Deterministic init mimicking torch.nn.Linear default (uniform +/- 1/sqrt(fan_in)).
    Weights stored as (in, out), f32 master copies."""
    dims = [input_dim, hidden_dim]
    h = hidden_dim
    for _ in range(num_layers - 1):
        dims.append(h // 2)
        h //= 2
    dims.append(n_classes)

    params = []
    for i in range(len(dims) - 1):
        d_in, d_out = dims[i], dims[i + 1]
        key, kw, kb = jax.random.split(key, 3)
        bound = 1.0 / math.sqrt(d_in)
        w = jax.random.uniform(kw, (d_in, d_out), jnp.float32, -bound, bound)
        b = jax.random.uniform(kb, (d_out,), jnp.float32, -bound, bound)
        params.append((w, b))
    return params


def prepare_fused_params(params):
    """f32 (W, b) list -> (tuple of bf16 weights, concatenated f32 bias row)."""
    weights_bf16 = tuple(w.astype(jnp.bfloat16) for w, _ in params)
    bias_concat = jnp.concatenate([b for _, b in params]).reshape(1, -1).astype(jnp.float32)
    return weights_bf16, bias_concat


@jax.jit
def base_mlp_forward(x, weights_bf16, bias_concat):
    # torch.nn.Flatten keeps dim 0; cast the flattened activations to bf16 for the MXU.
    n = x.shape[0]
    h = x.reshape(n, -1).astype(jnp.bfloat16)
    return fused_mlp_pallas(h, weights_bf16, bias_concat)


if __name__ == "__main__":
    # Small shapes consistent with the module: NCHW input flattened into the first Linear.
    batch, C, H, W = 2, 4, 16, 16
    input_dim = C * H * W        # 1024
    hidden_dim = 32
    num_layers = 2               # -> Linear(1024,32), ReLU, Linear(32,16), ReLU, Linear(16,8)
    n_classes = 8

    key = jax.random.PRNGKey(0)
    kx, kp = jax.random.split(key)
    x = jax.random.normal(kx, (batch, C, H, W), jnp.float32)
    params = init_base_mlp_params(kp, input_dim, hidden_dim, num_layers, n_classes)
    weights_bf16, bias_concat = prepare_fused_params(params)

    out = base_mlp_forward(x, weights_bf16, bias_concat)
    out = jax.block_until_ready(out)
    assert out.shape == (batch, n_classes), out.shape

    # Reference check in plain JAX using the SAME numerics (bf16 matmul inputs, f32 accum,
    # f32 bias/ReLU epilogue) so the comparison is tight.
    ref = x.reshape(batch, -1).astype(jnp.bfloat16)
    for i, (w, b) in enumerate(params):
        y = jnp.dot(ref, w.astype(jnp.bfloat16), preferred_element_type=jnp.float32) + b
        if i < len(params) - 1:
            y = jnp.maximum(y, 0.0)
            ref = y.astype(jnp.bfloat16)
        else:
            ref = y
    assert jnp.allclose(out, ref, atol=1e-3, rtol=1e-3), (out, ref)

    print("KERNEL_OK")
</pallas_src>

<mosaic_0001>
module attributes {stable_mosaic.version = 11 : i64} {
  func.func @_fused_mlp_kernel(%arg0: memref<2x1024xbf16, #tpu.memory_space<vmem>>, %arg1: memref<1024x32xbf16, #tpu.memory_space<vmem>>, %arg2: memref<32x16xbf16, #tpu.memory_space<vmem>>, %arg3: memref<16x8xbf16, #tpu.memory_space<vmem>>, %arg4: memref<1x56xf32, #tpu.memory_space<vmem>>, %arg5: memref<2x8xf32, #tpu.memory_space<vmem>>) attributes {dimension_semantics = [], scalar_prefetch = 0 : i64, scratch_operands = 0 : i64, tpu.core_type = #tpu.core_type<tc>} {
    %c0 = arith.constant 0 : index
    %c0_0 = arith.constant 0 : index
    %0 = vector.load %arg4[%c0, %c0_0] : memref<1x56xf32, #tpu.memory_space<vmem>>, vector<1x56xf32>
    %c0_1 = arith.constant 0 : index
    %c0_2 = arith.constant 0 : index
    %1 = vector.load %arg0[%c0_1, %c0_2] : memref<2x1024xbf16, #tpu.memory_space<vmem>>, vector<2x1024xbf16>
    %c0_3 = arith.constant 0 : index
    %c0_4 = arith.constant 0 : index
    %2 = vector.load %arg1[%c0_3, %c0_4] : memref<1024x32xbf16, #tpu.memory_space<vmem>>, vector<1024x32xbf16>
    %cst = arith.constant dense<0.000000e+00> : vector<2x32xf32>
    %3 = tpu.matmul %1, %2, %cst {dimension_numbers = #tpu.dot_dimension_numbers<[1], [0], [0], [1], [0, 0, 1, 1], [], []>} : vector<2x1024xbf16>, vector<1024x32xbf16>, vector<2x32xf32> -> vector<2x32xf32>
    %4 = vector.extract_strided_slice %0 {offsets = [0, 0], sizes = [1, 32], strides = [1, 1]} : vector<1x56xf32> to vector<1x32xf32>
    %5 = vector.broadcast %4 : vector<1x32xf32> to vector<2x32xf32>
    %6 = arith.addf %3, %5 : vector<2x32xf32>
    %cst_5 = arith.constant 0.000000e+00 : f32
    %7 = vector.broadcast %cst_5 : f32 to vector<2x32xf32>
    %8 = arith.maximumf %6, %7 : vector<2x32xf32>
    %9 = arith.truncf %8 : vector<2x32xf32> to vector<2x32xbf16>
    %c0_6 = arith.constant 0 : index
    %c0_7 = arith.constant 0 : index
    %10 = vector.load %arg2[%c0_6, %c0_7] : memref<32x16xbf16, #tpu.memory_space<vmem>>, vector<32x16xbf16>
    %cst_8 = arith.constant dense<0.000000e+00> : vector<2x16xf32>
    %11 = tpu.matmul %9, %10, %cst_8 {dimension_numbers = #tpu.dot_dimension_numbers<[1], [0], [0], [1], [0, 0, 1, 1], [], []>} : vector<2x32xbf16>, vector<32x16xbf16>, vector<2x16xf32> -> vector<2x16xf32>
    %12 = vector.extract_strided_slice %0 {offsets = [0, 32], sizes = [1, 16], strides = [1, 1]} : vector<1x56xf32> to vector<1x16xf32>
    %13 = vector.broadcast %12 : vector<1x16xf32> to vector<2x16xf32>
    %14 = arith.addf %11, %13 : vector<2x16xf32>
    %cst_9 = arith.constant 0.000000e+00 : f32
    %15 = vector.broadcast %cst_9 : f32 to vector<2x16xf32>
    %16 = arith.maximumf %14, %15 : vector<2x16xf32>
    %17 = arith.truncf %16 : vector<2x16xf32> to vector<2x16xbf16>
    %c0_10 = arith.constant 0 : index
    %c0_11 = arith.constant 0 : index
    %18 = vector.load %arg3[%c0_10, %c0_11] : memref<16x8xbf16, #tpu.memory_space<vmem>>, vector<16x8xbf16>
    %cst_12 = arith.constant dense<0.000000e+00> : vector<2x8xf32>
    %19 = tpu.matmul %17, %18, %cst_12 {dimension_numbers = #tpu.dot_dimension_numbers<[1], [0], [0], [1], [0, 0, 1, 1], [], []>} : vector<2x16xbf16>, vector<16x8xbf16>, vector<2x8xf32> -> vector<2x8xf32>
    %20 = vector.extract_strided_slice %0 {offsets = [0, 48], sizes = [1, 8], strides = [1, 1]} : vector<1x56xf32> to vector<1x8xf32>
    %21 = vector.broadcast %20 : vector<1x8xf32> to vector<2x8xf32>
    %22 = arith.addf %19, %21 : vector<2x8xf32>
    %c0_13 = arith.constant 0 : index
    %c0_14 = arith.constant 0 : index
    %23 = vector.load %arg5[%c0_13, %c0_14] : memref<2x8xf32, #tpu.memory_space<vmem>>, vector<2x8xf32>
    tpu.vector_store %arg5[%c0_13, %c0_14], %22 {strides = array<i32>} : memref<2x8xf32, #tpu.memory_space<vmem>>, vector<2x8xf32>,
    return
  }
}

</mosaic_0001>

<llo_original>
// kernel: base_mlp_forward.1
$region0: #{base_mlp_forward.1}
  #allocation0 [shape = 'u32[]', space=smem, size = 0x4, offset = 0x4, fixed_abs, tag = 'smem constant byte address 0x4 - core index']
  #allocation1 [shape = 'u32[144,128]{1,0:T(1,128)}', space=vmem, size = 0x12000, scoped, tag = 'internal scratch']
  %s0 = inlined_call_operand.vmem [shape: bf16[2,1024], index: 0, kind: input, shape index: {}]
  %s1 = inlined_call_operand.vmem [shape: bf16[1024,32], index: 1, kind: input, shape index: {}]
  %s2 = inlined_call_operand.vmem [shape: bf16[32,16], index: 2, kind: input, shape index: {}]
  %s3 = inlined_call_operand.vmem [shape: bf16[16,8], index: 3, kind: input, shape index: {}]
  %s4 = inlined_call_operand.vmem [shape: f32[1,56], index: 4, kind: input, shape index: {}]
  %s5 = inlined_call_operand.hbm [shape: f32[2,8], index: 5, kind: output, shape index: {}]
  %s6 = sld [smem:[#allocation0]]
  $region30: #{base_mlp_forward.1} parent=0
    _
  %s8 = ssub.s32 1, %s6
  %s9 = scalar_select 0, %s8, %s6
  $region1: #{base_mlp_forward.1} parent=0
    #allocation2 [shape = 'u8[1024]{0}', space=vmem, size = 0x400, scoped, tag = 'output window, operand 0, single buffered']
    #allocation3 [shape = 's32[1]{0}', space=sflag, size = 0x4, scoped, tag = 'scoped memory for base_mlp_forward.1']
    %10 = vsyncpa [#allocation3], 0
    // Predicated region
    $region2: #{base_mlp_forward.1} parent=1 // pred_check
      _
    $region3: #{base_mlp_forward.1} parent=1 // pred_check_branch
      %12 = sbr.rel (0) target = $region5
    $region4: #{base_mlp_forward.1} parent=1 // pred_region
      _
    $region5: #{base_mlp_forward.1} parent=1 // pred_fallthru
      _
    // Predicated region
    $region6: #{base_mlp_forward.1} parent=1 // pred_check
      _
    $region7: #{base_mlp_forward.1} parent=1 // pred_check_branch
      %14 = sbr.rel (0) target = $region9
    $region8: #{base_mlp_forward.1} parent=1 // pred_region
      _
    $region9: #{base_mlp_forward.1} parent=1 // pred_fallthru
      _
    // Predicated region
    $region10: #{base_mlp_forward.1} parent=1 // pred_check
      _
    $region11: #{base_mlp_forward.1} parent=1 // pred_check_branch
      %16 = sbr.rel (0) target = $region13
    $region12: #{base_mlp_forward.1} parent=1 // pred_region
      _
    $region13: #{base_mlp_forward.1} parent=1 // pred_fallthru
      _
    // Predicated region
    $region14: #{base_mlp_forward.1} parent=1 // pred_check
      _
    $region15: #{base_mlp_forward.1} parent=1 // pred_check_branch
      %18 = sbr.rel (0) target = $region17
    $region16: #{base_mlp_forward.1} parent=1 // pred_region
      _
    $region17: #{base_mlp_forward.1} parent=1 // pred_fallthru
      _
    // Predicated region
    $region18: #{base_mlp_forward.1} parent=1 // pred_check
      _
    $region19: #{base_mlp_forward.1} parent=1 // pred_check_branch
      %20 = sbr.rel (0) target = $region21
    $region20: #{base_mlp_forward.1} parent=1 // pred_region
      _
    $region21: #{base_mlp_forward.1} parent=1 // pred_fallthru
      _
    %v22 = vld [vmem:[%s4] sm:$0x1]
    %v23 = vld [vmem:[%s0] sm:$0xff]
    %v24 = vld [vmem:[%s1] sm:$0xf]
    %v25 = vld [vmem:[%s1 + $0x4] sm:$0xf]
    %v26 = vld [vmem:[%s1 + $0x8] sm:$0xf]
    %v27 = vld [vmem:[%s1 + $0xc] sm:$0xf]
    %v28 = vld [vmem:[%s1 + $0x10] sm:$0xf]
    %v29 = vld [vmem:[%s1 + $0x14] sm:$0xf]
    %v30 = vld [vmem:[%s1 + $0x18] sm:$0xf]
    %v31 = vld [vmem:[%s1 + $0x1c] sm:$0xf]
    %v32 = vld [vmem:[%s1 + $0x20] sm:$0xf]
    %v33 = vld [vmem:[%s1 + $0x24] sm:$0xf]
    %v34 = vld [vmem:[%s1 + $0x28] sm:$0xf]
    %v35 = vld [vmem:[%s1 + $0x2c] sm:$0xf]
    %v36 = vld [vmem:[%s1 + $0x30] sm:$0xf]
    %v37 = vld [vmem:[%s1 + $0x34] sm:$0xf]
    %v38 = vld [vmem:[%s1 + $0x38] sm:$0xf]
    %v39 = vld [vmem:[%s1 + $0x3c] sm:$0xf]
    %v40 = vld [vmem:[%s1 + $0x40] sm:$0xf]
    %v41 = vld [vmem:[%s1 + $0x44] sm:$0xf]
    %v42 = vld [vmem:[%s1 + $0x48] sm:$0xf]
    %v43 = vld [vmem:[%s1 + $0x4c] sm:$0xf]
    %v44 = vld [vmem:[%s1 + $0x50] sm:$0xf]
    %v45 = vld [vmem:[%s1 + $0x54] sm:$0xf]
    %v46 = vld [vmem:[%s1 + $0x58] sm:$0xf]
    %v47 = vld [vmem:[%s1 + $0x5c] sm:$0xf]
    %v48 = vld [vmem:[%s1 + $0x60] sm:$0xf]
    %v49 = vld [vmem:[%s1 + $0x64] sm:$0xf]
    %v50 = vld [vmem:[%s1 + $0x68] sm:$0xf]
    %v51 = vld [vmem:[%s1 + $0x6c] sm:$0xf]
    %v52 = vld [vmem:[%s1 + $0x70] sm:$0xf]
    %v53 = vld [vmem:[%s1 + $0x74] sm:$0xf]
    %v54 = vld [vmem:[%s1 + $0x78] sm:$0xf]
    %v55 = vld [vmem:[%s1 + $0x7c] sm:$0xf]
    %v56 = vld [vmem:[%s1 + $0x80] sm:$0xf]
    %v57 = vld [vmem:[%s1 + $0x84] sm:$0xf]
    %v58 = vld [vmem:[%s1 + $0x88] sm:$0xf]
    %v59 = vld [vmem:[%s1 + $0x8c] sm:$0xf]
    %v60 = vld [vmem:[%s1 + $0x90] sm:$0xf]
    %v61 = vld [vmem:[%s1 + $0x94] sm:$0xf]
    %v62 = vld [vmem:[%s1 + $0x98] sm:$0xf]
    %v63 = vld [vmem:[%s1 + $0x9c] sm:$0xf]
    %v64 = vld [vmem:[%s1 + $0xa0] sm:$0xf]
    %v65 = vld [vmem:[%s1 + $0xa4] sm:$0xf]
    %v66 = vld [vmem:[%s1 + $0xa8] sm:$0xf]
    %v67 = vld [vmem:[%s1 + $0xac] sm:$0xf]
    %v68 = vld [vmem:[%s1 + $0xb0] sm:$0xf]
    %v69 = vld [vmem:[%s1 + $0xb4] sm:$0xf]
    %v70 = vld [vmem:[%s1 + $0xb8] sm:$0xf]
    %v71 = vld [vmem:[%s1 + $0xbc] sm:$0xf]
    %v72 = vld [vmem:[%s1 + $0xc0] sm:$0xf]
    %v73 = vld [vmem:[%s1 + $0xc4] sm:$0xf]
    %v74 = vld [vmem:[%s1 + $0xc8] sm:$0xf]
    %v75 = vld [vmem:[%s1 + $0xcc] sm:$0xf]
    %v76 = vld [vmem:[%s1 + $0xd0] sm:$0xf]
    %v77 = vld [vmem:[%s1 + $0xd4] sm:$0xf]
    %v78 = vld [vmem:[%s1 + $0xd8] sm:$0xf]
    %v79 = vld [vmem:[%s1 + $0xdc] sm:$0xf]
    %v80 = vld [vmem:[%s1 + $0xe0] sm:$0xf]
    %v81 = vld [vmem:[%s1 + $0xe4] sm:$0xf]
    %v82 = vld [vmem:[%s1 + $0xe8] sm:$0xf]
    %v83 = vld [vmem:[%s1 + $0xec] sm:$0xf]
    %v84 = vld [vmem:[%s1 + $0xf0] sm:$0xf]
    %v85 = vld [vmem:[%s1 + $0xf4] sm:$0xf]
    %v86 = vld [vmem:[%s1 + $0xf8] sm:$0xf]
    %v87 = vld [vmem:[%s1 + $0xfc] sm:$0xf]
    %v88 = vld [vmem:[%s1 + $0x100] sm:$0xf]
    %v89 = vld [vmem:[%s1 + $0x104] sm:$0xf]
    %v90 = vld [vmem:[%s1 + $0x108] sm:$0xf]
    %v91 = vld [vmem:[%s1 + $0x10c] sm:$0xf]
    %v92 = vld [vmem:[%s1 + $0x110] sm:$0xf]
    %v93 = vld [vmem:[%s1 + $0x114] sm:$0xf]
    %v94 = vld [vmem:[%s1 + $0x118] sm:$0xf]
    %v95 = vld [vmem:[%s1 + $0x11c] sm:$0xf]
    %v96 = vld [vmem:[%s1 + $0x120] sm:$0xf]
    %v97 = vld [vmem:[%s1 + $0x124] sm:$0xf]
    %v98 = vld [vmem:[%s1 + $0x128] sm:$0xf]
    %v99 = vld [vmem:[%s1 + $0x12c] sm:$0xf]
    %v100 = vld [vmem:[%s1 + $0x130] sm:$0xf]
    %v101 = vld [vmem:[%s1 + $0x134] sm:$0xf]
    %v102 = vld [vmem:[%s1 + $0x138] sm:$0xf]
    %v103 = vld [vmem:[%s1 + $0x13c] sm:$0xf]
    %v104 = vld [vmem:[%s1 + $0x140] sm:$0xf]
    %v105 = vld [vmem:[%s1 + $0x144] sm:$0xf]
    %v106 = vld [vmem:[%s1 + $0x148] sm:$0xf]
    %v107 = vld [vmem:[%s1 + $0x14c] sm:$0xf]
    %v108 = vld [vmem:[%s1 + $0x150] sm:$0xf]
    %v109 = vld [vmem:[%s1 + $0x154] sm:$0xf]
    %v110 = vld [vmem:[%s1 + $0x158] sm:$0xf]
    %v111 = vld [vmem:[%s1 + $0x15c] sm:$0xf]
    %v112 = vld [vmem:[%s1 + $0x160] sm:$0xf]
    %v113 = vld [vmem:[%s1 + $0x164] sm:$0xf]
    %v114 = vld [vmem:[%s1 + $0x168] sm:$0xf]
    %v115 = vld [vmem:[%s1 + $0x16c] sm:$0xf]
    %v116 = vld [vmem:[%s1 + $0x170] sm:$0xf]
    %v117 = vld [vmem:[%s1 + $0x174] sm:$0xf]
    %v118 = vld [vmem:[%s1 + $0x178] sm:$0xf]
    %v119 = vld [vmem:[%s1 + $0x17c] sm:$0xf]
    %v120 = vld [vmem:[%s1 + $0x180] sm:$0xf]
    %v121 = vld [vmem:[%s1 + $0x184] sm:$0xf]
    %v122 = vld [vmem:[%s1 + $0x188] sm:$0xf]
    %v123 = vld [vmem:[%s1 + $0x18c] sm:$0xf]
    %v124 = vld [vmem:[%s1 + $0x190] sm:$0xf]
    %v125 = vld [vmem:[%s1 + $0x194] sm:$0xf]
    %v126 = vld [vmem:[%s1 + $0x198] sm:$0xf]
    %v127 = vld [vmem:[%s1 + $0x19c] sm:$0xf]
    %v128 = vld [vmem:[%s1 + $0x1a0] sm:$0xf]
    %v129 = vld [vmem:[%s1 + $0x1a4] sm:$0xf]
    %v130 = vld [vmem:[%s1 + $0x1a8] sm:$0xf]
    %v131 = vld [vmem:[%s1 + $0x1ac] sm:$0xf]
    %v132 = vld [vmem:[%s1 + $0x1b0] sm:$0xf]
    %v133 = vld [vmem:[%s1 + $0x1b4] sm:$0xf]
    %v134 = vld [vmem:[%s1 + $0x1b8] sm:$0xf]
    %v135 = vld [vmem:[%s1 + $0x1bc] sm:$0xf]
    %v136 = vld [vmem:[%s1 + $0x1c0] sm:$0xf]
    %v137 = vld [vmem:[%s1 + $0x1c4] sm:$0xf]
    %v138 = vld [vmem:[%s1 + $0x1c8] sm:$0xf]
    %v139 = vld [vmem:[%s1 + $0x1cc] sm:$0xf]
    %v140 = vld [vmem:[%s1 + $0x1d0] sm:$0xf]
    %v141 = vld [vmem:[%s1 + $0x1d4] sm:$0xf]
    %v142 = vld [vmem:[%s1 + $0x1d8] sm:$0xf]
    %v143 = vld [vmem:[%s1 + $0x1dc] sm:$0xf]
    %v144 = vld [vmem:[%s1 + $0x1e0] sm:$0xf]
    %v145 = vld [vmem:[%s1 + $0x1e4] sm:$0xf]
    %v146 = vld [vmem:[%s1 + $0x1e8] sm:$0xf]
    %v147 = vld [vmem:[%s1 + $0x1ec] sm:$0xf]
    %v148 = vld [vmem:[%s1 + $0x1f0] sm:$0xf]
    %v149 = vld [vmem:[%s1 + $0x1f4] sm:$0xf]
    %v150 = vld [vmem:[%s1 + $0x1f8] sm:$0xf]
    %v151 = vld [vmem:[%s1 + $0x1fc] sm:$0xf]
    %v153 = vlaneseq
    %v154 = vshrl.u32 %v153, 7
    %v155 = vsub.s32 0, %v154
    %v156 = vrot.slane %v22, %v155
    %v159 = vcombine.high %v23, %v23
    %v161 = vunpack.c.l.s4 1966171168
    %v162 = vunpack.c.0.s8 %v161
    %v163 = vlaneseq
    %v164 = vshrl.u32 %v163, 7
    %v165 = vsub.s32 %v162, %v164
    %v166 = vrot.slane %v23, %v165
    %v168 = vunpack.c.l.s4 1966171168
    %v169 = vunpack.c.0.s8 %v168
    %v170 = vlaneseq
    %v171 = vshrl.u32 %v170, 7
    %v172 = vsub.s32 %v169, %v171
    %v173 = vrot.slane %v159, %v172
    %v174 = vcombine.high %v166, %v166
    %v175 = vcombine.high %v173, %v173
    %v177 = vunpack.c.l.s4 1966171168
    %v178 = vunpack.c.0.s8 %v177
    %v179 = vlaneseq
    %v180 = vshrl.u32 %v179, 7
    %v181 = vsub.s32 %v178, %v180
    %v182 = vrot.slane %v166, %v181
    %v184 = vunpack.c.l.s4 1966171168
    %v185 = vunpack.c.0.s8 %v184
    %v186 = vlaneseq
    %v187 = vshrl.u32 %v186, 7
    %v188 = vsub.s32 %v185, %v187
    %v189 = vrot.slane %v173, %v188
    %v191 = vunpack.c.l.s4 1966171168
    %v192 = vunpack.c.0.s8 %v191
    %v193 = vlaneseq
    %v194 = vshrl.u32 %v193, 7
    %v195 = vsub.s32 %v192, %v194
    %v196 = vrot.slane %v174, %v195
    %v198 = vunpack.c.l.s4 1966171168
    %v199 = vunpack.c.0.s8 %v198
    %v200 = vlaneseq
    %v201 = vshrl.u32 %v200, 7
    %v202 = vsub.s32 %v199, %v201
    %v203 = vrot.slane %v175, %v202
    %v204 = vcombine.high %v182, %v182
    %v205 = vcombine.high %v189, %v189
    %v206 = vcombine.high %v196, %v196
    %v207 = vcombine.high %v203, %v203
    %v344 = vunpack.c.l.b16 %v24
    %v345 = vunpack.c.l.b16 %v25
    %v346 = vunpack.c.l.b16 %v26
    %v347 = vunpack.c.l.b16 %v27
    %v348 = vunpack.c.l.b16 %v28
    %v349 = vunpack.c.l.b16 %v29
    %v350 = vunpack.c.l.b16 %v30
    %v351 = vunpack.c.l.b16 %v31
    %v352 = vunpack.c.l.b16 %v32
    %v353 = vunpack.c.l.b16 %v33
    %v354 = vunpack.c.l.b16 %v34
    %v355 = vunpack.c.l.b16 %v35
    %v356 = vunpack.c.l.b16 %v36
    %v357 = vunpack.c.l.b16 %v37
    %v358 = vunpack.c.l.b16 %v38
    %v359 = vunpack.c.l.b16 %v39
    %v360 = vunpack.c.l.b16 %v40
    %v361 = vunpack.c.l.b16 %v41
    %v362 = vunpack.c.l.b16 %v42
    %v363 = vunpack.c.l.b16 %v43
    %v364 = vunpack.c.l.b16 %v44
    %v365 = vunpack.c.l.b16 %v45
    %v366 = vunpack.c.l.b16 %v46
    %v367 = vunpack.c.l.b16 %v47
    %v368 = vunpack.c.l.b16 %v48
    %v369 = vunpack.c.l.b16 %v49
    %v370 = vunpack.c.l.b16 %v50
    %v371 = vunpack.c.l.b16 %v51
    %v372 = vunpack.c.l.b16 %v52
    %v373 = vunpack.c.l.b16 %v53
    %v374 = vunpack.c.l.b16 %v54
    %v375 = vunpack.c.l.b16 %v55
    %v376 = vunpack.c.l.b16 %v56
    %v377 = vunpack.c.l.b16 %v57
    %v378 = vunpack.c.l.b16 %v58
    %v379 = vunpack.c.l.b16 %v59
    %v380 = vunpack.c.l.b16 %v60
    %v381 = vunpack.c.l.b16 %v61
    %v382 = vunpack.c.l.b16 %v62
    %v383 = vunpack.c.l.b16 %v63
    %v384 = vunpack.c.l.b16 %v64
    %v385 = vunpack.c.l.b16 %v65
    %v386 = vunpack.c.l.b16 %v66
    %v387 = vunpack.c.l.b16 %v67
    %v388 = vunpack.c.l.b16 %v68
    %v389 = vunpack.c.l.b16 %v69
    %v390 = vunpack.c.l.b16 %v70
    %v391 = vunpack.c.l.b16 %v71
    %v392 = vunpack.c.l.b16 %v72
    %v393 = vunpack.c.l.b16 %v73
    %v394 = vunpack.c.l.b16 %v74
    %v395 = vunpack.c.l.b16 %v75
    %v396 = vunpack.c.l.b16 %v76
    %v397 = vunpack.c.l.b16 %v77
    %v398 = vunpack.c.l.b16 %v78
    %v399 = vunpack.c.l.b16 %v79
    %v400 = vunpack.c.l.b16 %v80
    %v401 = vunpack.c.l.b16 %v81
    %v402 = vunpack.c.l.b16 %v82
    %v403 = vunpack.c.l.b16 %v83
    %v404 = vunpack.c.l.b16 %v84
    %v405 = vunpack.c.l.b16 %v85
    %v406 = vunpack.c.l.b16 %v86
    %v407 = vunpack.c.l.b16 %v87
    %v408 = vunpack.c.l.b16 %v88
    %v409 = vunpack.c.l.b16 %v89
    %v410 = vunpack.c.l.b16 %v90
    %v411 = vunpack.c.l.b16 %v91
    %v412 = vunpack.c.l.b16 %v92
    %v413 = vunpack.c.l.b16 %v93
    %v414 = vunpack.c.l.b16 %v94
    %v415 = vunpack.c.l.b16 %v95
    %v416 = vunpack.c.l.b16 %v96
    %v417 = vunpack.c.l.b16 %v97
    %v418 = vunpack.c.l.b16 %v98
    %v419 = vunpack.c.l.b16 %v99
    %v420 = vunpack.c.l.b16 %v100
    %v421 = vunpack.c.l.b16 %v101
    %v422 = vunpack.c.l.b16 %v102
    %v423 = vunpack.c.l.b16 %v103
    %v424 = vunpack.c.l.b16 %v104
    %v425 = vunpack.c.l.b16 %v105
    %v426 = vunpack.c.l.b16 %v106
    %v427 = vunpack.c.l.b16 %v107
    %v428 = vunpack.c.l.b16 %v108
    %v429 = vunpack.c.l.b16 %v109
    %v430 = vunpack.c.l.b16 %v110
    %v431 = vunpack.c.l.b16 %v111
    %v432 = vunpack.c.l.b16 %v112
    %v433 = vunpack.c.l.b16 %v113
    %v434 = vunpack.c.l.b16 %v114
    %v435 = vunpack.c.l.b16 %v115
    %v436 = vunpack.c.l.b16 %v116
    %v437 = vunpack.c.l.b16 %v117
    %v438 = vunpack.c.l.b16 %v118
    %v439 = vunpack.c.l.b16 %v119
    %v440 = vunpack.c.l.b16 %v120
    %v441 = vunpack.c.l.b16 %v121
    %v442 = vunpack.c.l.b16 %v122
    %v443 = vunpack.c.l.b16 %v123
    %v444 = vunpack.c.l.b16 %v124
    %v445 = vunpack.c.l.b16 %v125
    %v446 = vunpack.c.l.b16 %v126
    %v447 = vunpack.c.l.b16 %v127
    %v448 = vunpack.c.l.b16 %v128
    %v449 = vunpack.c.l.b16 %v129
    %v450 = vunpack.c.l.b16 %v130
    %v451 = vunpack.c.l.b16 %v131
    %v452 = vunpack.c.l.b16 %v132
    %v453 = vunpack.c.l.b16 %v133
    %v454 = vunpack.c.l.b16 %v134
    %v455 = vunpack.c.l.b16 %v135
    %v456 = vunpack.c.l.b16 %v136
    %v457 = vunpack.c.l.b16 %v137
    %v458 = vunpack.c.l.b16 %v138
    %v459 = vunpack.c.l.b16 %v139
    %v460 = vunpack.c.l.b16 %v140
    %v461 = vunpack.c.l.b16 %v141
    %v462 = vunpack.c.l.b16 %v142
    %v463 = vunpack.c.l.b16 %v143
    %v464 = vunpack.c.l.b16 %v144
    %v465 = vunpack.c.l.b16 %v145
    %v466 = vunpack.c.l.b16 %v146
    %v467 = vunpack.c.l.b16 %v147
    %v468 = vunpack.c.l.b16 %v148
    %v469 = vunpack.c.l.b16 %v149
    %v470 = vunpack.c.l.b16 %v150
    %v471 = vunpack.c.l.b16 %v151
    %v472 = vpack.c.b16 %v345, %v344
    %v473 = vpack.c.b16 %v347, %v346
    %v474 = vpack.c.b16 %v349, %v348
    %v475 = vpack.c.b16 %v351, %v350
    %v476 = vpack.c.b16 %v353, %v352
    %v477 = vpack.c.b16 %v355, %v354
    %v478 = vpack.c.b16 %v357, %v356
    %v479 = vpack.c.b16 %v359, %v358
    %v480 = vpack.c.b16 %v361, %v360
    %v481 = vpack.c.b16 %v363, %v362
    %v482 = vpack.c.b16 %v365, %v364
    %v483 = vpack.c.b16 %v367, %v366
    %v484 = vpack.c.b16 %v369, %v368
    %v485 = vpack.c.b16 %v371, %v370
    %v486 = vpack.c.b16 %v373, %v372
    %v487 = vpack.c.b16 %v375, %v374
    %v488 = vpack.c.b16 %v377, %v376
    %v489 = vpack.c.b16 %v379, %v378
    %v490 = vpack.c.b16 %v381, %v380
    %v491 = vpack.c.b16 %v383, %v382
    %v492 = vpack.c.b16 %v385, %v384
    %v493 = vpack.c.b16 %v387, %v386
    %v494 = vpack.c.b16 %v389, %v388
    %v495 = vpack.c.b16 %v391, %v390
    %v496 = vpack.c.b16 %v393, %v392
    %v497 = vpack.c.b16 %v395, %v394
    %v498 = vpack.c.b16 %v397, %v396
    %v499 = vpack.c.b16 %v399, %v398
    %v500 = vpack.c.b16 %v401, %v400
    %v501 = vpack.c.b16 %v403, %v402
    %v502 = vpack.c.b16 %v405, %v404
    %v503 = vpack.c.b16 %v407, %v406
    %v504 = vpack.c.b16 %v409, %v408
    %v505 = vpack.c.b16 %v411, %v410
    %v506 = vpack.c.b16 %v413, %v412
    %v507 = vpack.c.b16 %v415, %v414
    %v508 = vpack.c.b16 %v417, %v416
    %v509 = vpack.c.b16 %v419, %v418
    %v510 = vpack.c.b16 %v421, %v420
    %v511 = vpack.c.b16 %v423, %v422
    %v512 = vpack.c.b16 %v425, %v424
    %v513 = vpack.c.b16 %v427, %v426
    %v514 = vpack.c.b16 %v429, %v428
    %v515 = vpack.c.b16 %v431, %v430
    %v516 = vpack.c.b16 %v433, %v432
    %v517 = vpack.c.b16 %v435, %v434
    %v518 = vpack.c.b16 %v437, %v436
    %v519 = vpack.c.b16 %v439, %v438
    %v520 = vpack.c.b16 %v441, %v440
    %v521 = vpack.c.b16 %v443, %v442
    %v522 = vpack.c.b16 %v445, %v444
    %v523 = vpack.c.b16 %v447, %v446
    %v524 = vpack.c.b16 %v449, %v448
    %v525 = vpack.c.b16 %v451, %v450
    %v526 = vpack.c.b16 %v453, %v452
    %v527 = vpack.c.b16 %v455, %v454
    %v528 = vpack.c.b16 %v457, %v456
    %v529 = vpack.c.b16 %v459, %v458
    %v530 = vpack.c.b16 %v461, %v460
    %v531 = vpack.c.b16 %v463, %v462
    %v532 = vpack.c.b16 %v465, %v464
    %v533 = vpack.c.b16 %v467, %v466
    %v534 = vpack.c.b16 %v469, %v468
    %v535 = vpack.c.b16 %v471, %v470
    %600 = vmatprep.subr.bf16.mxu0 0
    %601 = vmatpush1.bf16.msra.mxu0 %v472
    %602 = vmatprep.subr.bf16.mxu0 0
    %603 = vmatpush1.bf16.msra.mxu0 %v473
    %604 = vmatprep.subr.bf16.mxu0 0
    %605 = vmatpush1.bf16.msra.mxu0 %v474
    %606 = vmatprep.subr.bf16.mxu0 0
    %607 = vmatpush1.bf16.msra.mxu0 %v475
    %608 = vmatprep.subr.bf16.mxu0 0
    %609 = vmatpush1.bf16.msra.mxu0 %v476
    %610 = vmatprep.subr.bf16.mxu0 0
    %611 = vmatpush1.bf16.msra.mxu0 %v477
    %612 = vmatprep.subr.bf16.mxu0 0
    %613 = vmatpush1.bf16.msra.mxu0 %v478
    %614 = vmatprep.subr.bf16.mxu0 0
    %615 = vmatpush1.bf16.msra.mxu0 %v479
    %616 = vmatprep.subr.bf16.mxu0 0
    %617 = vmatpush1.bf16.msra.mxu0 %v480
    %618 = vmatprep.subr.bf16.mxu0 0
    %619 = vmatpush1.bf16.msra.mxu0 %v481
    %620 = vmatprep.subr.bf16.mxu0 0
    %621 = vmatpush1.bf16.msra.mxu0 %v482
    %622 = vmatprep.subr.bf16.mxu0 0
    %623 = vmatpush1.bf16.msra.mxu0 %v483
    %624 = vmatprep.subr.bf16.mxu0 0
    %625 = vmatpush1.bf16.msra.mxu0 %v484
    %626 = vmatprep.subr.bf16.mxu0 0
    %627 = vmatpush1.bf16.msra.mxu0 %v485
    %628 = vmatprep.subr.bf16.mxu0 0
    %629 = vmatpush1.bf16.msra.mxu0 %v486
    %630 = vmatprep.subr.bf16.mxu0 0
    %631 = vmatpush1.bf16.msra.mxu0 %v487
    %632 = vmatprep.mubr.bf16.mxu0 %v196
    %633 = vmatmul.mubr.bf16.gmra.mrb[0].mxu0 %v182
    %v634 = vpop.f32.mrb[0].mxu0
    %v635 = vadd.f32 %v156, %v634
    %v636 = vpop.f32.mrb[0].mxu0
    %v637 = vpop.f32.mrb[0].mxu0
    %v638 = vpop.f32.mrb[0].mxu0
    %639 = vdwg.mxu0
    %640 = vmatprep.subr.bf16.mxu0 0
    %641 = vmatpush1.bf16.msra.mxu0 %v488
    %642 = vmatprep.subr.bf16.mxu0 0
    %643 = vmatpush1.bf16.msra.mxu0 %v489
    %644 = vmatprep.subr.bf16.mxu0 0
    %645 = vmatpush1.bf16.msra.mxu0 %v490
    %646 = vmatprep.subr.bf16.mxu0 0
    %647 = vmatpush1.bf16.msra.mxu0 %v491
    %648 = vmatprep.subr.bf16.mxu0 0
    %649 = vmatpush1.bf16.msra.mxu0 %v492
    %650 = vmatprep.subr.bf16.mxu0 0
    %651 = vmatpush1.bf16.msra.mxu0 %v493
    %652 = vmatprep.subr.bf16.mxu0 0
    %653 = vmatpush1.bf16.msra.mxu0 %v494
    %654 = vmatprep.subr.bf16.mxu0 0
    %655 = vmatpush1.bf16.msra.mxu0 %v495
    %656 = vmatprep.subr.bf16.mxu0 0
    %657 = vmatpush1.bf16.msra.mxu0 %v496
    %658 = vmatprep.subr.bf16.mxu0 0
    %659 = vmatpush1.bf16.msra.mxu0 %v497
    %660 = vmatprep.subr.bf16.mxu0 0
    %661 = vmatpush1.bf16.msra.mxu0 %v498
    %662 = vmatprep.subr.bf16.mxu0 0
    %663 = vmatpush1.bf16.msra.mxu0 %v499
    %664 = vmatprep.subr.bf16.mxu0 0
    %665 = vmatpush1.bf16.msra.mxu0 %v500
    %666 = vmatprep.subr.bf16.mxu0 0
    %667 = vmatpush1.bf16.msra.mxu0 %v501
    %668 = vmatprep.subr.bf16.mxu0 0
    %669 = vmatpush1.bf16.msra.mxu0 %v502
    %670 = vmatprep.subr.bf16.mxu0 0
    %671 = vmatpush1.bf16.msra.mxu0 %v503
    %672 = vmatprep.mubr.bf16.mxu0 %v206
    %673 = vmatmul.mubr.bf16.gmra.mrb[0].mxu0 %v204
    %v674 = vpop.f32.mrb[0].mxu0
    %v675 = vadd.f32 %v635, %v674
    %v676 = vpop.f32.mrb[0].mxu0
    %v677 = vpop.f32.mrb[0].mxu0
    %v678 = vpop.f32.mrb[0].mxu0
    %679 = vdwg.mxu0
    %680 = vmatprep.subr.bf16.mxu0 0
    %681 = vmatpush1.bf16.msra.mxu0 %v504
    %682 = vmatprep.subr.bf16.mxu0 0
    %683 = vmatpush1.bf16.msra.mxu0 %v505
    %684 = vmatprep.subr.bf16.mxu0 0
    %685 = vmatpush1.bf16.msra.mxu0 %v506
    %686 = vmatprep.subr.bf16.mxu0 0
    %687 = vmatpush1.bf16.msra.mxu0 %v507
    %688 = vmatprep.subr.bf16.mxu0 0
    %689 = vmatpush1.bf16.msra.mxu0 %v508
    %690 = vmatprep.subr.bf16.mxu0 0
    %691 = vmatpush1.bf16.msra.mxu0 %v509
    %692 = vmatprep.subr.bf16.mxu0 0
    %693 = vmatpush1.bf16.msra.mxu0 %v510
    %694 = vmatprep.subr.bf16.mxu0 0
    %695 = vmatpush1.bf16.msra.mxu0 %v511
    %696 = vmatprep.subr.bf16.mxu0 0
    %697 = vmatpush1.bf16.msra.mxu0 %v512
    %698 = vmatprep.subr.bf16.mxu0 0
    %699 = vmatpush1.bf16.msra.mxu0 %v513
    %700 = vmatprep.subr.bf16.mxu0 0
    %701 = vmatpush1.bf16.msra.mxu0 %v514
    %702 = vmatprep.subr.bf16.mxu0 0
    %703 = vmatpush1.bf16.msra.mxu0 %v515
    %704 = vmatprep.subr.bf16.mxu0 0
    %705 = vmatpush1.bf16.msra.mxu0 %v516
    %706 = vmatprep.subr.bf16.mxu0 0
    %707 = vmatpush1.bf16.msra.mxu0 %v517
    %708 = vmatprep.subr.bf16.mxu0 0
    %709 = vmatpush1.bf16.msra.mxu0 %v518
    %710 = vmatprep.subr.bf16.mxu0 0
    %711 = vmatpush1.bf16.msra.mxu0 %v519
    %712 = vmatprep.mubr.bf16.mxu0 %v203
    %713 = vmatmul.mubr.bf16.gmra.mrb[0].mxu0 %v189
    %v714 = vpop.f32.mrb[0].mxu0
    %v715 = vadd.f32 %v675, %v714
    %v716 = vpop.f32.mrb[0].mxu0
    %v717 = vpop.f32.mrb[0].mxu0
    %v718 = vpop.f32.mrb[0].mxu0
    %719 = vdwg.mxu0
    %720 = vmatprep.subr.bf16.mxu0 0
    %721 = vmatpush1.bf16.msra.mxu0 %v520
    %722 = vmatprep.subr.bf16.mxu0 0
    %723 = vmatpush1.bf16.msra.mxu0 %v521
    %724 = vmatprep.subr.bf16.mxu0 0
    %725 = vmatpush1.bf16.msra.mxu0 %v522
    %726 = vmatprep.subr.bf16.mxu0 0
    %727 = vmatpush1.bf16.msra.mxu0 %v523
    %728 = vmatprep.subr.bf16.mxu0 0
    %729 = vmatpush1.bf16.msra.mxu0 %v524
    %730 = vmatprep.subr.bf16.mxu0 0
    %731 = vmatpush1.bf16.msra.mxu0 %v525
    %732 = vmatprep.subr.bf16.mxu0 0
    %733 = vmatpush1.bf16.msra.mxu0 %v526
    %734 = vmatprep.subr.bf16.mxu0 0
    %735 = vmatpush1.bf16.msra.mxu0 %v527
    %736 = vmatprep.subr.bf16.mxu0 0
    %737 = vmatpush1.bf16.msra.mxu0 %v528
    %738 = vmatprep.subr.bf16.mxu0 0
    %739 = vmatpush1.bf16.msra.mxu0 %v529
    %740 = vmatprep.subr.bf16.mxu0 0
    %741 = vmatpush1.bf16.msra.mxu0 %v530
    %742 = vmatprep.subr.bf16.mxu0 0
    %743 = vmatpush1.bf16.msra.mxu0 %v531
    %744 = vmatprep.subr.bf16.mxu0 0
    %745 = vmatpush1.bf16.msra.mxu0 %v532
    %746 = vmatprep.subr.bf16.mxu0 0
    %747 = vmatpush1.bf16.msra.mxu0 %v533
    %748 = vmatprep.subr.bf16.mxu0 0
    %749 = vmatpush1.bf16.msra.mxu0 %v534
    %750 = vmatprep.subr.bf16.mxu0 0
    %751 = vmatpush1.bf16.msra.mxu0 %v535
    %752 = vmatprep.mubr.bf16.mxu0 %v207
    %753 = vmatmul.mubr.bf16.gmra.mrb[0].mxu0 %v205
    %v754 = vpop.f32.mrb[0].mxu0
    %v755 = vadd.f32 %v715, %v754
    %v756 = vpop.f32.mrb[0].mxu0
    %v757 = vpop.f32.mrb[0].mxu0
    %v758 = vpop.f32.mrb[0].mxu0
    %759 = vdwg.mxu0
    %v760 = vmax.f32 %v755, 0.0
    %v761 = vpack.c.bf16 %v760, %v760
    %v762 = vld [vmem:[%s2] sm:$0xf]
    %v763 = vld [vmem:[%s2 + $0x4] sm:$0xf]
    %v764 = vld [vmem:[%s2 + $0x8] sm:$0xf]
    %v765 = vld [vmem:[%s2 + $0xc] sm:$0xf]
    %v770 = vunpack.c.l.b16 %v762
    %v771 = vunpack.c.l.b16 %v763
    %v772 = vunpack.c.l.b16 %v764
    %v773 = vunpack.c.l.b16 %v765
    %v774 = vpack.c.b16 %v771, %v770
    %v775 = vpack.c.b16 %v773, %v772
    %778 = vrot.lane.b32.xlu0 %v156, 96
    %v779 = vpop.permute.xlu0 %778
    %vm781 = vcmask 261120
    %v783 = vsel %vm781, %v761, 0
    %785 = vmatprep.subr.bf16.mxu0 0
    %786 = vmatpush1.bf16.msra.mxu0 %v774
    %787 = vmatprep.subr.bf16.mxu0 0
    %788 = vmatpush1.bf16.msra.mxu0 %v775
    %789 = vmatprep.subr.bf16.mxu0 0
    %790 = vmatpush1.bf16.msra.mxu0 0
    %791 = vmatprep.subr.bf16.mxu0 0
    %792 = vmatpush1.bf16.msra.mxu0 0
    %793 = vmatprep.subr.bf16.mxu0 0
    %794 = vmatpush1.bf16.msra.mxu0 0
    %795 = vmatprep.subr.bf16.mxu0 0
    %796 = vmatpush1.bf16.msra.mxu0 0
    %797 = vmatprep.subr.bf16.mxu0 0
    %798 = vmatpush1.bf16.msra.mxu0 0
    %799 = vmatprep.subr.bf16.mxu0 0
    %800 = vmatpush1.bf16.msra.mxu0 0
    %801 = vmatprep.subr.bf16.mxu0 0
    %802 = vmatpush1.bf16.msra.mxu0 0
    %803 = vmatprep.subr.bf16.mxu0 0
    %804 = vmatpush1.bf16.msra.mxu0 0
    %805 = vmatprep.subr.bf16.mxu0 0
    %806 = vmatpush1.bf16.msra.mxu0 0
    %807 = vmatprep.subr.bf16.mxu0 0
    %808 = vmatpush1.bf16.msra.mxu0 0
    %809 = vmatprep.subr.bf16.mxu0 0
    %810 = vmatpush1.bf16.msra.mxu0 0
    %811 = vmatprep.subr.bf16.mxu0 0
    %812 = vmatpush1.bf16.msra.mxu0 0
    %813 = vmatprep.subr.bf16.mxu0 0
    %814 = vmatpush1.bf16.msra.mxu0 0
    %815 = vmatprep.subr.bf16.mxu0 0
    %816 = vmatpush1.bf16.msra.mxu0 0
    %817 = vmatprep.mubr.bf16.mxu0 0
    %818 = vmatmul.mubr.bf16.gmra.mrb[0].mxu0 %v783
    %v819 = vpop.f32.mrb[0].mxu0
    %v820 = vadd.f32 %v779, %v819
    %v821 = vpop.f32.mrb[0].mxu0
    %v822 = vpop.f32.mrb[0].mxu0
    %v823 = vpop.f32.mrb[0].mxu0
    %824 = vdwg.mxu0
    %v825 = vmax.f32 %v820, 0.0
    %v826 = vpack.c.bf16 %v825, %v825
    %v827 = vld [vmem:[%s3] sm:$0xf]
    %v828 = vld [vmem:[%s3 + $0x4] sm:$0xf]
    %v831 = vunpack.c.l.b16 %v827
    %v832 = vunpack.c.l.b16 %v828
    %v833 = vpack.c.b16 %v832, %v831
    %835 = vrot.lane.b32.xlu0 %v156, 80
    %v836 = vpop.permute.xlu0 %835
    %vm838 = vcmask 130048
    %v840 = vsel %vm838, %v826, 0
    %842 = vmatprep.subr.bf16.mxu0 0
    %843 = vmatpush1.bf16.msra.mxu0 %v833
    %844 = vmatprep.subr.bf16.mxu0 0
    %845 = vmatpush1.bf16.msra.mxu0 0
    %846 = vmatprep.subr.bf16.mxu0 0
    %847 = vmatpush1.bf16.msra.mxu0 0
    %848 = vmatprep.subr.bf16.mxu0 0
    %849 = vmatpush1.bf16.msra.mxu0 0
    %850 = vmatprep.subr.bf16.mxu0 0
    %851 = vmatpush1.bf16.msra.mxu0 0
    %852 = vmatprep.subr.bf16.mxu0 0
    %853 = vmatpush1.bf16.msra.mxu0 0
    %854 = vmatprep.subr.bf16.mxu0 0
    %855 = vmatpush1.bf16.msra.mxu0 0
    %856 = vmatprep.subr.bf16.mxu0 0
    %857 = vmatpush1.bf16.msra.mxu0 0
    %858 = vmatprep.subr.bf16.mxu0 0
    %859 = vmatpush1.bf16.msra.mxu0 0
    %860 = vmatprep.subr.bf16.mxu0 0
    %861 = vmatpush1.bf16.msra.mxu0 0
    %862 = vmatprep.subr.bf16.mxu0 0
    %863 = vmatpush1.bf16.msra.mxu0 0
    %864 = vmatprep.subr.bf16.mxu0 0
    %865 = vmatpush1.bf16.msra.mxu0 0
    %866 = vmatprep.subr.bf16.mxu0 0
    %867 = vmatpush1.bf16.msra.mxu0 0
    %868 = vmatprep.subr.bf16.mxu0 0
    %869 = vmatpush1.bf16.msra.mxu0 0
    %870 = vmatprep.subr.bf16.mxu0 0
    %871 = vmatpush1.bf16.msra.mxu0 0
    %872 = vmatprep.subr.bf16.mxu0 0
    %873 = vmatpush1.bf16.msra.mxu0 0
    %874 = vmatprep.mubr.bf16.mxu0 0
    %875 = vmatmul.mubr.bf16.gmra.mrb[0].mxu0 %v840
    %v876 = vpop.f32.mrb[0].mxu0
    %v877 = vadd.f32 %v836, %v876
    %v878 = vpop.f32.mrb[0].mxu0
    %v879 = vpop.f32.mrb[0].mxu0
    %v880 = vpop.f32.mrb[0].mxu0
    %881 = vdwg.mxu0
    %vm882 = vcmask 58368
    %883 = vst.msk [vmem:[#allocation2] sm:$0x3] %vm882, %v877
    // Predicated region
    $region22: #{base_mlp_forward.1} parent=1 // pred_check
      _
    $region23: #{base_mlp_forward.1} parent=1 // pred_check_branch
      %885 = sbr.rel (0) target = $region25
    $region24: #{base_mlp_forward.1} parent=1 // pred_region
      %s887 = ssub.s32 32, 32
      %888 = vsyncadd [#allocation3], %s887
      %s890 = sshll.u32 [#allocation2], 4
      %s891 = int_to_ptr.vmem [resolvable:$true] %s890
      %893 = dma.vmem_to_hbm [thread:$0]  %s891, 32, %s5, [#allocation3]
    $region25: #{base_mlp_forward.1} parent=1 // pred_fallthru
      _
    // Predicated region
    $region26: #{base_mlp_forward.1} parent=1 // pred_check
      _
    $region27: #{base_mlp_forward.1} parent=1 // pred_check_branch
      %895 = sbr.rel (0) target = $region29
    $region28: #{base_mlp_forward.1} parent=1 // pred_region
      %896 = dma.done [#allocation3], 32
    $region29: #{base_mlp_forward.1} parent=1 // pred_fallthru
      _
    %897 = vsyncpa [#allocation3], 1

</llo_original>
